<compile_context>
chip_gen: v5e
topology: v5e:2x2
jax: 0.10.0
libtpu: 0.0.40
codegen_flags: <defaults>
</compile_context>

<pallas_src>
import functools
import math

import jax
import jax.numpy as jnp
from jax import lax
from jax.experimental import pallas as pl
from jax.experimental.pallas import tpu as pltpu

BN_EPS = 1e-5
_INV_SQRT2 = 0.7071067811865476


def _gelu_exact(z):
    # PyTorch nn.GELU default: 0.5 * z * (1 + erf(z / sqrt(2)))
    return 0.5 * z * (1.0 + lax.erf(z * _INV_SQRT2))


def _vmem_budget_bytes():
    """~70% of physical VMEM of the running chip (generation-aware)."""
    try:
        cap = int(pltpu.get_tpu_info().vmem_capacity_bytes)
    except Exception:
        cap = 64 * 1024 * 1024  # conservative (v7x-sized) fallback
    return max(16 * 1024 * 1024, int(cap * 0.70))


def _plan_tiles(N, C_in, C_out, HW_pad, budget_bytes, max_bblk=8):
    """Pick (B_blk, T_hw):  B_blk | N,  T_hw | HW_pad,  T_hw % 128 == 0.

    Sized so the double-buffered f32 input+output blocks of the apply phase
    fit the VMEM budget, while each block is big enough (~MBs) to amortize the
    ~0.35 us per-grid-step overhead.
    """
    # bytes per lane-column for (B_blk=1): in + out, double-buffered, f32
    bytes_per_col = 2 * 4 * (C_in + C_out)
    max_cols = max(128, (budget_bytes // bytes_per_col) // 128 * 128)

    # Largest lane-multiple tile that divides HW_pad and fits the budget.
    t = min(HW_pad, max_cols)
    t = max(128, (t // 128) * 128)
    while HW_pad % t != 0:
        t -= 128

    # If the whole HW fits in one tile but the block is still small, fold
    # multiple batch images into the block (keeps every DMA >= ~MBs).
    b = 1
    if t == HW_pad:
        target_cols = (4 * 1024 * 1024) // bytes_per_col  # aim ~4 MiB of blocks/step
        while (2 * b <= max_bblk
               and N % (2 * b) == 0
               and 2 * b * t <= max_cols
               and b * t < target_cols):
            b *= 2
    return b, t


# ----------------------------------------------------------------------------
# Fused single-shot kernel (whole padded tensor is VMEM resident).
# x is read from HBM exactly once.
# ----------------------------------------------------------------------------
def _fused_kernel(x_ref, w_ref, gamma_ref, beta_ref, o_ref, *, inv_m):
    # x_ref: (N, C_in, HWp); w_ref: (C_out, C_in); gamma/beta: (C_out, 1)
    # o_ref: (N, C_out, HWp)
    n = x_ref.shape[0]
    c_out = w_ref.shape[0]
    w = w_ref[...].astype(jnp.float32)

    def stats_body(b, carry):
        sy, sy2 = carry
        y = jnp.dot(w, x_ref[b].astype(jnp.float32),
                    preferred_element_type=jnp.float32)        # (C_out, HWp)
        sy = sy + jnp.sum(y, axis=1, keepdims=True)
        sy2 = sy2 + jnp.sum(y * y, axis=1, keepdims=True)
        return sy, sy2

    zeros = jnp.zeros((c_out, 1), jnp.float32)
    sy, sy2 = lax.fori_loop(0, n, stats_body, (zeros, zeros))

    mean = sy * inv_m
    var = jnp.maximum(sy2 * inv_m - mean * mean, 0.0)          # biased, like BN
    scale = gamma_ref[...] * lax.rsqrt(var + BN_EPS)
    shift = beta_ref[...] - mean * scale

    def apply_body(b, carry):
        y = jnp.dot(w, x_ref[b].astype(jnp.float32),
                    preferred_element_type=jnp.float32)
        z = y * scale + shift
        o_ref[b] = _gelu_exact(z).astype(o_ref.dtype)
        return carry

    lax.fori_loop(0, n, apply_body, 0)


# ----------------------------------------------------------------------------
# Phase 1 (two-phase path): per-channel sum(y) / sum(y^2) of y = W @ x.
# Leading "parallel" grid axis -> per-core accumulator slices (v7x megacore).
# ----------------------------------------------------------------------------
def _stats_kernel(x_ref, w_ref, sy_ref, sy2_ref, *, b_blk):
    # x_ref: (B_blk, C_in, T_hw); w_ref: (C_out, C_in)
    # sy_ref / sy2_ref: (1, C_out, 1) resident accumulators (one slice per core)
    step = pl.program_id(1)

    @pl.when(step == 0)
    def _():
        sy_ref[...] = jnp.zeros_like(sy_ref)
        sy2_ref[...] = jnp.zeros_like(sy2_ref)

    w = w_ref[...].astype(jnp.float32)
    sy = jnp.zeros(sy_ref.shape[1:], jnp.float32)
    sy2 = jnp.zeros(sy2_ref.shape[1:], jnp.float32)
    for b in range(b_blk):                        # static unroll, B_blk <= 8
        y = jnp.dot(w, x_ref[b].astype(jnp.float32),
                    preferred_element_type=jnp.float32)        # (C_out, T_hw)
        sy = sy + jnp.sum(y, axis=1, keepdims=True)
        sy2 = sy2 + jnp.sum(y * y, axis=1, keepdims=True)
    sy_ref[0] += sy
    sy2_ref[0] += sy2


# ----------------------------------------------------------------------------
# Phase 2 (two-phase path): conv + BN affine (precomputed scale/shift) + GELU.
# ----------------------------------------------------------------------------
def _apply_kernel(x_ref, w_ref, scale_ref, shift_ref, o_ref, *, b_blk):
    # x_ref: (B_blk, C_in, T_hw); w_ref: (C_out, C_in)
    # scale/shift: (C_out, 1); o_ref: (B_blk, C_out, T_hw)
    w = w_ref[...].astype(jnp.float32)
    scale = scale_ref[...]
    shift = shift_ref[...]
    for b in range(b_blk):
        y = jnp.dot(w, x_ref[b].astype(jnp.float32),
                    preferred_element_type=jnp.float32)
        z = y * scale + shift
        o_ref[b] = _gelu_exact(z).astype(o_ref.dtype)


def out_conv_forward(x_nchw, weight, bias, gamma, beta, *,
                     force_two_phase=False, max_batch_block=8):
    """x_nchw: (N, C_in, H, W); weight: (C_out, C_in); bias/gamma/beta: (C_out,).

    BatchNorm uses batch statistics (training mode); `bias` is accepted for
    API parity but cancels exactly under mean subtraction (eval-mode running
    stats would require reinstating it).
    """
    del bias  # cancels exactly under training-mode BatchNorm
    N, C_in, H, W = x_nchw.shape
    C_out = weight.shape[0]
    HW = H * W
    M = N * HW
    HW_pad = ((HW + 127) // 128) * 128            # lane-dense padding
    out_dtype = x_nchw.dtype                      # bf16 in -> bf16 out

    # Free reshape NCHW -> (N, C_in, HW); zero-pad HW up to a lane multiple
    # (padding contributes nothing to the batch statistics).
    x3 = x_nchw.reshape(N, C_in, HW)
    if HW_pad != HW:
        x3 = jnp.pad(x3, ((0, 0), (0, 0), (0, HW_pad - HW)))

    w_f32 = weight.astype(jnp.float32)
    gamma2 = gamma.astype(jnp.float32).reshape(C_out, 1)
    beta2 = beta.astype(jnp.float32).reshape(C_out, 1)

    budget = _vmem_budget_bytes()
    inv_m = 1.0 / float(M)

    # ------------------------- fused fast path --------------------------------
    fused_bytes = 4 * N * HW_pad * (C_in + C_out)         # f32 in + out, resident
    if (not force_two_phase) and (2 * fused_bytes <= budget):
        out3 = pl.pallas_call(
            functools.partial(_fused_kernel, inv_m=inv_m),
            out_shape=jax.ShapeDtypeStruct((N, C_out, HW_pad), out_dtype),
            grid=(1,),
            in_specs=[
                pl.BlockSpec((N, C_in, HW_pad), lambda i: (0, 0, 0)),
                pl.BlockSpec((C_out, C_in), lambda i: (0, 0)),
                pl.BlockSpec((C_out, 1), lambda i: (0, 0)),
                pl.BlockSpec((C_out, 1), lambda i: (0, 0)),
            ],
            out_specs=pl.BlockSpec((N, C_out, HW_pad), lambda i: (0, 0, 0)),
            compiler_params=pltpu.CompilerParams(
                dimension_semantics=("arbitrary",),
                vmem_limit_bytes=budget),
            cost_estimate=pl.CostEstimate(
                flops=4 * M * C_in * C_out + 8 * M * C_out,
                transcendentals=M * C_out,
                bytes_accessed=4 * N * HW_pad * (C_in + C_out)),
        )(x3, w_f32, gamma2, beta2)
        if HW_pad != HW:
            out3 = out3[:, :, :HW]
        return out3.reshape(N, C_out, H, W)

    # ------------------------- two-phase path ---------------------------------
    B_blk, T_hw = _plan_tiles(N, C_in, C_out, HW_pad, budget,
                              max_bblk=max_batch_block)
    n_batch_blocks = N // B_blk
    n_hw_tiles = HW_pad // T_hw
    total_work = n_batch_blocks * n_hw_tiles
    n_cores = 2 if (total_work >= 2 and total_work % 2 == 0) else 1
    wpc = total_work // n_cores                    # grid steps per core

    def x_stats_map(c, i):
        flat = c * wpc + i
        return (flat // n_hw_tiles, 0, flat % n_hw_tiles)

    # Phase 1: per-channel sum(y), sum(y^2) -- x read from HBM once, y never
    # materialized in HBM. Per-core accumulator slices are summed below.
    sy_parts, sy2_parts = pl.pallas_call(
        functools.partial(_stats_kernel, b_blk=B_blk),
        out_shape=(
            jax.ShapeDtypeStruct((n_cores, C_out, 1), jnp.float32),
            jax.ShapeDtypeStruct((n_cores, C_out, 1), jnp.float32),
        ),
        grid=(n_cores, wpc),
        in_specs=[
            pl.BlockSpec((B_blk, C_in, T_hw), x_stats_map),
            pl.BlockSpec((C_out, C_in), lambda c, i: (0, 0)),
        ],
        out_specs=(
            pl.BlockSpec((1, C_out, 1), lambda c, i: (c, 0, 0)),
            pl.BlockSpec((1, C_out, 1), lambda c, i: (c, 0, 0)),
        ),
        compiler_params=pltpu.CompilerParams(
            dimension_semantics=("parallel", "arbitrary"),
            vmem_limit_bytes=budget),
        cost_estimate=pl.CostEstimate(
            flops=2 * M * C_in * C_out + 4 * M * C_out,
            transcendentals=0,
            bytes_accessed=4 * N * C_in * HW_pad),
    )(x3, w_f32)

    sy = jnp.sum(sy_parts, axis=0)                 # (C_out, 1)
    sy2 = jnp.sum(sy2_parts, axis=0)               # (C_out, 1)

    # Fold batch statistics into a per-channel affine (tiny (C_out,) math).
    mean = sy * inv_m
    var = jnp.maximum(sy2 * inv_m - mean * mean, 0.0)   # biased var, like BN
    scale = gamma2 * lax.rsqrt(var + BN_EPS)
    shift = beta2 - mean * scale

    # Phase 2: conv + BN + GELU, fully parallel over (batch blocks, HW tiles).
    out3 = pl.pallas_call(
        functools.partial(_apply_kernel, b_blk=B_blk),
        out_shape=jax.ShapeDtypeStruct((N, C_out, HW_pad), out_dtype),
        grid=(n_batch_blocks, n_hw_tiles),
        in_specs=[
            pl.BlockSpec((B_blk, C_in, T_hw), lambda nb, t: (nb, 0, t)),
            pl.BlockSpec((C_out, C_in), lambda nb, t: (0, 0)),
            pl.BlockSpec((C_out, 1), lambda nb, t: (0, 0)),
            pl.BlockSpec((C_out, 1), lambda nb, t: (0, 0)),
        ],
        out_specs=pl.BlockSpec((B_blk, C_out, T_hw), lambda nb, t: (nb, 0, t)),
        compiler_params=pltpu.CompilerParams(
            dimension_semantics=("parallel", "parallel"),
            vmem_limit_bytes=budget),
        cost_estimate=pl.CostEstimate(
            flops=2 * M * C_in * C_out + 6 * M * C_out,
            transcendentals=M * C_out,
            bytes_accessed=4 * N * HW_pad * (C_in + C_out)),
    )(x3, w_f32, scale, shift)

    if HW_pad != HW:
        out3 = out3[:, :, :HW]
    return out3.reshape(N, C_out, H, W)


if __name__ == "__main__":
    key = jax.random.PRNGKey(0)
    k_x, k_w, k_b = jax.random.split(key, 3)

    # Small shapes consistent with the module: batch=2, in_channels=4,
    # out_channels=8, spatial 16x16.
    N, C_in, C_out, H, W = 2, 4, 8, 16, 16

    x = jax.random.normal(k_x, (N, C_in, H, W), dtype=jnp.float32)

    bound = 1.0 / math.sqrt(C_in)
    weight = jax.random.uniform(k_w, (C_out, C_in), jnp.float32, -bound, bound)
    bias = jax.random.uniform(k_b, (C_out,), jnp.float32, -bound, bound)
    gamma = jnp.ones((C_out,), jnp.float32)
    beta = jnp.zeros((C_out,), jnp.float32)

    # Exercise all three code paths on the same inputs:
    #   1) fused single-shot kernel (default for VMEM-resident tensors)
    #   2) two-phase path with batch folding (B_blk=2)
    #   3) two-phase path with the per-core-split stats accumulators
    out_fused = out_conv_forward(x, weight, bias, gamma, beta)
    out_two = out_conv_forward(x, weight, bias, gamma, beta,
                               force_two_phase=True)
    out_split = out_conv_forward(x, weight, bias, gamma, beta,
                                 force_two_phase=True, max_batch_block=1)
    jax.block_until_ready((out_fused, out_two, out_split))

    # Pure-JAX reference (conv1x1 + training-mode BN + exact GELU).
    y_ref = jnp.einsum("oc,nchw->nohw", weight, x) + bias.reshape(1, -1, 1, 1)
    mean_r = y_ref.mean(axis=(0, 2, 3), keepdims=True)
    var_r = y_ref.var(axis=(0, 2, 3), keepdims=True)     # biased, like BN
    z_ref = (y_ref - mean_r) * lax.rsqrt(var_r + BN_EPS)
    z_ref = z_ref * gamma.reshape(1, -1, 1, 1) + beta.reshape(1, -1, 1, 1)
    ref = 0.5 * z_ref * (1.0 + lax.erf(z_ref * _INV_SQRT2))

    for out in (out_fused, out_two, out_split):
        assert out.shape == (N, C_out, H, W)
        assert bool(jnp.all(jnp.isfinite(out)))
        assert jnp.allclose(out, ref, rtol=2e-4, atol=2e-4)
    print("KERNEL_OK")
</pallas_src>

<mosaic_0001>
module attributes {stable_mosaic.version = 11 : i64} {
  func.func @_fused_kernel(%arg0: i32, %arg1: memref<2x4x256xf32, #tpu.memory_space<vmem>>, %arg2: memref<8x4xf32, #tpu.memory_space<vmem>>, %arg3: memref<8x1xf32, #tpu.memory_space<vmem>>, %arg4: memref<8x1xf32, #tpu.memory_space<vmem>>, %arg5: memref<2x8x256xf32, #tpu.memory_space<vmem>>) attributes {dimension_semantics = [#tpu.dimension_semantics<arbitrary>], iteration_bounds = array<i64: 1>, scalar_prefetch = 0 : i64, scratch_operands = 0 : i64, tpu.core_type = #tpu.core_type<tc>, window_params = [{pipeline_mode = #tpu.pipeline_mode<synchronous>, transform_indices = @transform_0, window_bounds = array<i64: 2, 4, 256>}, {pipeline_mode = #tpu.pipeline_mode<synchronous>, transform_indices = @transform_1, window_bounds = array<i64: 8, 4>}, {pipeline_mode = #tpu.pipeline_mode<synchronous>, transform_indices = @transform_2, window_bounds = array<i64: 8, 1>}, {pipeline_mode = #tpu.pipeline_mode<synchronous>, transform_indices = @transform_3, window_bounds = array<i64: 8, 1>}, {pipeline_mode = #tpu.pipeline_mode<synchronous>, transform_indices = @transform_4, window_bounds = array<i64: 2, 8, 256>}]} {
    %c0 = arith.constant 0 : index
    %c0_0 = arith.constant 0 : index
    %0 = vector.load %arg2[%c0, %c0_0] : memref<8x4xf32, #tpu.memory_space<vmem>>, vector<8x4xf32>
    %cst = arith.constant 0.000000e+00 : f32
    %1 = vector.broadcast %cst : f32 to vector<8x1xf32>
    %c0_i32 = arith.constant 0 : i32
    %c2_i32 = arith.constant 2 : i32
    %2 = arith.addi %c0_i32, %c2_i32 : i32
    %c1_i32 = arith.constant 1 : i32
    %3:2 = scf.for %arg6 = %c0_i32 to %2 step %c1_i32 iter_args(%arg7 = %1, %arg8 = %1) -> (vector<8x1xf32>, vector<8x1xf32>)  : i32 {
      %21 = arith.index_cast %arg6 : i32 to index
      %c0_14 = arith.constant 0 : index
      %c0_15 = arith.constant 0 : index
      %22 = vector.load %arg1[%21, %c0_14, %c0_15] : memref<2x4x256xf32, #tpu.memory_space<vmem>>, vector<1x4x256xf32>
      %23 = vector.shape_cast %22 : vector<1x4x256xf32> to vector<4x256xf32>
      %cst_16 = arith.constant dense<0.000000e+00> : vector<8x256xf32>
      %24 = tpu.matmul %0, %23, %cst_16 {dimension_numbers = #tpu.dot_dimension_numbers<[1], [0], [0], [1], [0, 0, 1, 1], [], []>} : vector<8x4xf32>, vector<4x256xf32>, vector<8x256xf32> -> vector<8x256xf32>
      %cst_17 = arith.constant dense<0.000000e+00> : vector<8xf32>
      %25 = vector.multi_reduction <add>, %24, %cst_17 [1] : vector<8x256xf32> to vector<8xf32>
      %26 = vector.shape_cast %25 : vector<8xf32> to vector<8x1xf32>
      %27 = arith.addf %arg7, %26 : vector<8x1xf32>
      %28 = arith.mulf %24, %24 : vector<8x256xf32>
      %cst_18 = arith.constant dense<0.000000e+00> : vector<8xf32>
      %29 = vector.multi_reduction <add>, %28, %cst_18 [1] : vector<8x256xf32> to vector<8xf32>
      %30 = vector.shape_cast %29 : vector<8xf32> to vector<8x1xf32>
      %31 = arith.addf %arg8, %30 : vector<8x1xf32>
      scf.yield %27, %31 : vector<8x1xf32>, vector<8x1xf32>
    }
    %c2_i32_1 = arith.constant 2 : i32
    %cst_2 = arith.constant 0.001953125 : f32
    %4 = vector.broadcast %cst_2 : f32 to vector<8x1xf32>
    %5 = arith.mulf %3#0, %4 : vector<8x1xf32>
    %cst_3 = arith.constant 0.001953125 : f32
    %6 = vector.broadcast %cst_3 : f32 to vector<8x1xf32>
    %7 = arith.mulf %3#1, %6 : vector<8x1xf32>
    %8 = arith.mulf %5, %5 : vector<8x1xf32>
    %9 = arith.subf %7, %8 : vector<8x1xf32>
    %cst_4 = arith.constant 0.000000e+00 : f32
    %10 = vector.broadcast %cst_4 : f32 to vector<8x1xf32>
    %11 = arith.maximumf %9, %10 : vector<8x1xf32>
    %c0_5 = arith.constant 0 : index
    %c0_6 = arith.constant 0 : index
    %12 = vector.load %arg3[%c0_5, %c0_6] : memref<8x1xf32, #tpu.memory_space<vmem>>, vector<8x1xf32>
    %cst_7 = arith.constant 9.99999974E-6 : f32
    %13 = vector.broadcast %cst_7 : f32 to vector<8x1xf32>
    %14 = arith.addf %11, %13 : vector<8x1xf32>
    %15 = math.rsqrt %14 : vector<8x1xf32>
    %16 = arith.mulf %12, %15 : vector<8x1xf32>
    %c0_8 = arith.constant 0 : index
    %c0_9 = arith.constant 0 : index
    %17 = vector.load %arg4[%c0_8, %c0_9] : memref<8x1xf32, #tpu.memory_space<vmem>>, vector<8x1xf32>
    %18 = arith.mulf %5, %16 : vector<8x1xf32>
    %19 = arith.subf %17, %18 : vector<8x1xf32>
    %c0_i32_10 = arith.constant 0 : i32
    %c2_i32_11 = arith.constant 2 : i32
    %20 = arith.addi %c0_i32_10, %c2_i32_11 : i32
    %c1_i32_12 = arith.constant 1 : i32
    scf.for %arg6 = %c0_i32_10 to %20 step %c1_i32_12  : i32 {
      %21 = arith.index_cast %arg6 : i32 to index
      %c0_14 = arith.constant 0 : index
      %c0_15 = arith.constant 0 : index
      %22 = vector.load %arg1[%21, %c0_14, %c0_15] : memref<2x4x256xf32, #tpu.memory_space<vmem>>, vector<1x4x256xf32>
      %23 = vector.shape_cast %22 : vector<1x4x256xf32> to vector<4x256xf32>
      %cst_16 = arith.constant dense<0.000000e+00> : vector<8x256xf32>
      %24 = tpu.matmul %0, %23, %cst_16 {dimension_numbers = #tpu.dot_dimension_numbers<[1], [0], [0], [1], [0, 0, 1, 1], [], []>} : vector<8x4xf32>, vector<4x256xf32>, vector<8x256xf32> -> vector<8x256xf32>
      %25 = vector.broadcast %16 : vector<8x1xf32> to vector<8x256xf32>
      %26 = arith.mulf %24, %25 : vector<8x256xf32>
      %27 = vector.broadcast %19 : vector<8x1xf32> to vector<8x256xf32>
      %28 = arith.addf %26, %27 : vector<8x256xf32>
      %cst_17 = arith.constant 5.000000e-01 : f32
      %29 = vector.broadcast %cst_17 : f32 to vector<8x256xf32>
      %30 = arith.mulf %29, %28 : vector<8x256xf32>
      %cst_18 = arith.constant 0.707106769 : f32
      %31 = vector.broadcast %cst_18 : f32 to vector<8x256xf32>
      %32 = arith.mulf %28, %31 : vector<8x256xf32>
      %33 = math.erf %32 : vector<8x256xf32>
      %cst_19 = arith.constant 1.000000e+00 : f32
      %34 = vector.broadcast %cst_19 : f32 to vector<8x256xf32>
      %35 = arith.addf %34, %33 : vector<8x256xf32>
      %36 = arith.mulf %30, %35 : vector<8x256xf32>
      %37 = arith.index_cast %arg6 : i32 to index
      %c0_20 = arith.constant 0 : index
      %c0_21 = arith.constant 0 : index
      %38 = vector.load %arg5[%37, %c0_20, %c0_21] : memref<2x8x256xf32, #tpu.memory_space<vmem>>, vector<1x8x256xf32>
      %39 = vector.shape_cast %38 : vector<1x8x256xf32> to vector<8x256xf32>
      %40 = vector.shape_cast %36 : vector<8x256xf32> to vector<1x8x256xf32>
      tpu.vector_store %arg5[%37, %c0_20, %c0_21], %40 {strides = array<i32>} : memref<2x8x256xf32, #tpu.memory_space<vmem>>, vector<1x8x256xf32>,
    }
    %c2_i32_13 = arith.constant 2 : i32
    return
  }
  func.func @transform_0(%arg0: i32) -> (i32, i32, i32) {
    %c0_i32 = arith.constant 0 : i32
    %c0_i32_0 = arith.constant 0 : i32
    %c0_i32_1 = arith.constant 0 : i32
    %c0_i32_2 = arith.constant 0 : i32
    return %c0_i32, %c0_i32_0, %c0_i32_1 : i32, i32, i32
  }
  func.func @transform_1(%arg0: i32) -> (i32, i32) {
    %c0_i32 = arith.constant 0 : i32
    %c0_i32_0 = arith.constant 0 : i32
    %c0_i32_1 = arith.constant 0 : i32
    return %c0_i32, %c0_i32_0 : i32, i32
  }
  func.func @transform_2(%arg0: i32) -> (i32, i32) {
    %c0_i32 = arith.constant 0 : i32
    %c0_i32_0 = arith.constant 0 : i32
    %c0_i32_1 = arith.constant 0 : i32
    return %c0_i32, %c0_i32_0 : i32, i32
  }
  func.func @transform_3(%arg0: i32) -> (i32, i32) {
    %c0_i32 = arith.constant 0 : i32
    %c0_i32_0 = arith.constant 0 : i32
    %c0_i32_1 = arith.constant 0 : i32
    return %c0_i32, %c0_i32_0 : i32, i32
  }
  func.func @transform_4(%arg0: i32) -> (i32, i32, i32) {
    %c0_i32 = arith.constant 0 : i32
    %c0_i32_0 = arith.constant 0 : i32
    %c0_i32_1 = arith.constant 0 : i32
    %c0_i32_2 = arith.constant 0 : i32
    return %c0_i32, %c0_i32_0, %c0_i32_1 : i32, i32, i32
  }
}

</mosaic_0001>

<llo_original>
// kernel: tpu_custom_call.1
$region0: #{tpu_custom_call.1}
  #allocation0 [shape = 'u32[]', space=smem, size = 0x4, offset = 0x4, fixed_abs, tag = 'smem constant byte address 0x4 - core index']
  #allocation1 [shape = 'u32[72,128]{1,0:T(1,128)}', space=vmem, size = 0x9000, scoped, tag = 'internal scratch']
  %s0 = inlined_call_operand.vmem [shape: f32[2,4,256], index: 0, kind: input, shape index: {}]
  %s1 = inlined_call_operand.vmem [shape: f32[8,4], index: 1, kind: input, shape index: {}]
  %s2 = inlined_call_operand.vmem [shape: f32[8,1], index: 2, kind: input, shape index: {}]
  %s3 = inlined_call_operand.vmem [shape: f32[8,1], index: 3, kind: input, shape index: {}]
  %s4 = inlined_call_operand.hbm [shape: f32[2,8,256], index: 4, kind: output, shape index: {}]
  %s5 = sld [smem:[#allocation0]]
  $region40: #{tpu_custom_call.1} parent=0
    _
  %s7 = ssub.s32 1, %s5
  %s8 = scalar_select 0, %s7, %s5
  $region1: #{tpu_custom_call.1} parent=0
    #allocation2 [shape = 'u8[16384]{0}', space=vmem, size = 0x4000, scoped, tag = 'output window, operand 0, single buffered']
    #allocation3 [shape = 's32[1]{0}', space=sflag, size = 0x4, scoped, tag = 'scoped memory for tpu_custom_call.1']
    %9 = vsyncpa [#allocation3], 0
    // Predicated region
    $region2: #{tpu_custom_call.1} parent=1 // pred_check
      _
    $region3: #{tpu_custom_call.1} parent=1 // pred_check_branch
      %11 = sbr.rel (0) target = $region5
    $region4: #{tpu_custom_call.1} parent=1 // pred_region
      _
    $region5: #{tpu_custom_call.1} parent=1 // pred_fallthru
      _
    // Predicated region
    $region6: #{tpu_custom_call.1} parent=1 // pred_check
      _
    $region7: #{tpu_custom_call.1} parent=1 // pred_check_branch
      %13 = sbr.rel (0) target = $region9
    $region8: #{tpu_custom_call.1} parent=1 // pred_region
      _
    $region9: #{tpu_custom_call.1} parent=1 // pred_fallthru
      _
    // Predicated region
    $region10: #{tpu_custom_call.1} parent=1 // pred_check
      _
    $region11: #{tpu_custom_call.1} parent=1 // pred_check_branch
      %15 = sbr.rel (0) target = $region13
    $region12: #{tpu_custom_call.1} parent=1 // pred_region
      _
    $region13: #{tpu_custom_call.1} parent=1 // pred_fallthru
      _
    // Predicated region
    $region14: #{tpu_custom_call.1} parent=1 // pred_check
      _
    $region15: #{tpu_custom_call.1} parent=1 // pred_check_branch
      %17 = sbr.rel (0) target = $region17
    $region16: #{tpu_custom_call.1} parent=1 // pred_region
      _
    $region17: #{tpu_custom_call.1} parent=1 // pred_fallthru
      _
    %v18 = vld [vmem:[%s1] sm:$0xff]
    loop: start=0, step=1, limit=2
    $region18: #{tpu_custom_call.1} parent=1 // loop_pre_header
      _
    $region19: #{tpu_custom_call.1} parent=1 // loop_header
      %s20 = sphi 0, %s24
      %p21 = scmp.ge.s32.totalorder %s20, 2
      %v25 = vphi 0.0, %v87
      %v26 = vphi 0.0, %v93
    $region20: #{tpu_custom_call.1} parent=1 // loop_header_branch
      %23 = sbr.rel (%p21) target = $region24
    $region21: #{tpu_custom_call.1} parent=1 // loop_body
      %s27 = smul.u32 %s20, 2
      %s28 = smul.addr %s27, 4
      %s29 = scalar_lea.vmem %s0, %s28
      %v30 = vld [vmem:[%s29] sm:$0xff]
      %32 = vst [vmem:[#allocation1] ss:$2 sm:$0xff] %v30
      %v33 = vld.sshfl [vmem:[#allocation1] sm:$0xff pattern:$0x75316420]
      %v34 = vld.sshfl [vmem:[#allocation1 + $0x8] sm:$0xff pattern:$0x75316420]
      %vm35 = vcmask 31744
      %v37 = vsel %vm35, %v18, 0
      %vm39 = vcmask 1043456
      %v40 = vsel %vm39, %v33, 0
      %v42 = vsel %vm39, %v34, 0
      %44 = vmatpush.msra.mxu0 0.0
      %45 = vmatpush.msra.mxu0 0.0
      %46 = vmatpush.msra.mxu0 0.0
      %47 = vmatpush.msra.mxu0 0.0
      %48 = vmatpush.msra.mxu0 0.0
      %49 = vmatpush.msra.mxu0 0.0
      %50 = vmatpush.msra.mxu0 0.0
      %51 = vmatpush.msra.mxu0 0.0
      %52 = vmatpush.msra.mxu0 0.0
      %53 = vmatpush.msra.mxu0 0.0
      %54 = vmatpush.msra.mxu0 0.0
      %55 = vmatpush.msra.mxu0 0.0
      %56 = vmatpush.msra.mxu0 0.0
      %57 = vmatpush.msra.mxu0 0.0
      %58 = vmatpush.msra.mxu0 0.0
      %59 = vmatpush.msra.mxu0 %v40
      %60 = vmatmul.f32.gmra.mxu0 %v37
      %v61 = vpop.f32.mrf.mxu0
      %v62 = vadd.f32 0.0, %v61
      %63 = vdwg.mxu0
      %64 = vmatpush.msra.mxu0 0.0
      %65 = vmatpush.msra.mxu0 0.0
      %66 = vmatpush.msra.mxu0 0.0
      %67 = vmatpush.msra.mxu0 0.0
      %68 = vmatpush.msra.mxu0 0.0
      %69 = vmatpush.msra.mxu0 0.0
      %70 = vmatpush.msra.mxu0 0.0
      %71 = vmatpush.msra.mxu0 0.0
      %72 = vmatpush.msra.mxu0 0.0
      %73 = vmatpush.msra.mxu0 0.0
      %74 = vmatpush.msra.mxu0 0.0
      %75 = vmatpush.msra.mxu0 0.0
      %76 = vmatpush.msra.mxu0 0.0
      %77 = vmatpush.msra.mxu0 0.0
      %78 = vmatpush.msra.mxu0 0.0
      %79 = vmatpush.msra.mxu0 %v42
      %80 = vmatmul.f32.gmra.mxu0 %v37
      %v81 = vpop.f32.mrf.mxu0
      %v82 = vadd.f32 0.0, %v81
      %83 = vdwg.mxu0
      %v84 = vadd.f32 %v62, %v82
      %85 = vadd.xlane.f32.xlu0 %v84
      %v86 = vpop.xlane.xlu0 %85
      %v87 = vadd.f32 %v25, %v86
      %v88 = vmul.f32 %v62, %v62
      %v89 = vmul.f32 %v82, %v82
      %v90 = vadd.f32 %v88, %v89
      %91 = vadd.xlane.f32.xlu0 %v90
      %v92 = vpop.xlane.xlu0 %91
      %v93 = vadd.f32 %v26, %v92
    $region22: #{tpu_custom_call.1} parent=1 // loop_footer
      %s24 = sadd.s32 1, %s20
    $region23: #{tpu_custom_call.1} parent=1 // loop_footer_branch
      %19 = sbr.rel target = $region19
    $region24: #{tpu_custom_call.1} parent=1 // loop_exit
      _
    %v94 = vmul.f32 %v25, 0.001953125
    %v95 = vmul.f32 %v26, 0.001953125
    %v96 = vmul.f32 %v94, %v94
    %v97 = vsub.f32 %v95, %v96
    %v98 = vmax.f32 %v97, 0.0
    %v99 = vld [vmem:[%s2] sm:$0xff]
    %v100 = vadd.f32 %v98, 1e-05
    %v101 = vrsqrt.pop %v100
    %v102 = vmul.f32 %v101, %v100
    %v103 = vmul.f32 %v102, %v101
    %v104 = vmul.f32 0.5, %v103
    %v105 = vsub.f32 1.5, %v104
    %v106 = vmul.f32 %v101, %v105
    %vm107 = vweird.f32 %v100
    %vm108 = vweird.f32 %v101
    %vm109 = vmor %vm107, %vm108
    %v110 = vsel %vm109, %v101, %v106
    %v111 = vmul.f32 %v99, %v110
    %v112 = vld [vmem:[%s3] sm:$0xff]
    %v113 = vmul.f32 %v94, %v111
    %v114 = vsub.f32 %v112, %v113
    loop: start=0, step=1, limit=2
    $region25: #{tpu_custom_call.1} parent=1 // loop_pre_header
      _
    $region26: #{tpu_custom_call.1} parent=1 // loop_header
      %s116 = sphi 0, %s120
      %p117 = scmp.ge.s32.totalorder %s116, 2
    $region27: #{tpu_custom_call.1} parent=1 // loop_header_branch
      %119 = sbr.rel (%p117) target = $region31
    $region28: #{tpu_custom_call.1} parent=1 // loop_body
      %s121 = smul.u32 %s116, 2
      %s122 = smul.addr %s121, 4
      %s123 = scalar_lea.vmem %s0, %s122
      %v124 = vld [vmem:[%s123] sm:$0xff]
      %126 = vst [vmem:[#allocation1] ss:$2 sm:$0xff] %v124
      %v127 = vld.sshfl [vmem:[#allocation1] sm:$0xff pattern:$0x75316420]
      %v128 = vld.sshfl [vmem:[#allocation1 + $0x8] sm:$0xff pattern:$0x75316420]
      %vm129 = vcmask 31744
      %v131 = vsel %vm129, %v18, 0
      %vm133 = vcmask 1043456
      %v134 = vsel %vm133, %v127, 0
      %v136 = vsel %vm133, %v128, 0
      %138 = vmatpush.msra.mxu0 0.0
      %139 = vmatpush.msra.mxu0 0.0
      %140 = vmatpush.msra.mxu0 0.0
      %141 = vmatpush.msra.mxu0 0.0
      %142 = vmatpush.msra.mxu0 0.0
      %143 = vmatpush.msra.mxu0 0.0
      %144 = vmatpush.msra.mxu0 0.0
      %145 = vmatpush.msra.mxu0 0.0
      %146 = vmatpush.msra.mxu0 0.0
      %147 = vmatpush.msra.mxu0 0.0
      %148 = vmatpush.msra.mxu0 0.0
      %149 = vmatpush.msra.mxu0 0.0
      %150 = vmatpush.msra.mxu0 0.0
      %151 = vmatpush.msra.mxu0 0.0
      %152 = vmatpush.msra.mxu0 0.0
      %153 = vmatpush.msra.mxu0 %v134
      %154 = vmatmul.f32.gmra.mxu0 %v131
      %v155 = vpop.f32.mrf.mxu0
      %v156 = vadd.f32 0.0, %v155
      %157 = vdwg.mxu0
      %158 = vmatpush.msra.mxu0 0.0
      %159 = vmatpush.msra.mxu0 0.0
      %160 = vmatpush.msra.mxu0 0.0
      %161 = vmatpush.msra.mxu0 0.0
      %162 = vmatpush.msra.mxu0 0.0
      %163 = vmatpush.msra.mxu0 0.0
      %164 = vmatpush.msra.mxu0 0.0
      %165 = vmatpush.msra.mxu0 0.0
      %166 = vmatpush.msra.mxu0 0.0
      %167 = vmatpush.msra.mxu0 0.0
      %168 = vmatpush.msra.mxu0 0.0
      %169 = vmatpush.msra.mxu0 0.0
      %170 = vmatpush.msra.mxu0 0.0
      %171 = vmatpush.msra.mxu0 0.0
      %172 = vmatpush.msra.mxu0 0.0
      %173 = vmatpush.msra.mxu0 %v136
      %174 = vmatmul.f32.gmra.mxu0 %v131
      %v175 = vpop.f32.mrf.mxu0
      %v176 = vadd.f32 0.0, %v175
      %177 = vdwg.mxu0
      %179 = vset.pattern.permute.xlu0 0
      %180 = vperm.xlu0 %179, %v111
      %v181 = vpop.permute.xlu0 %180
      %v183 = vmul.f32 %v156, %v181
      %v184 = vmul.f32 %v176, %v181
      %186 = vset.pattern.permute.xlu0 0
      %187 = vperm.xlu0 %186, %v114
      %v188 = vpop.permute.xlu0 %187
      %v190 = vadd.f32 %v183, %v188
      %v191 = vadd.f32 %v184, %v188
      %v192 = vmul.f32 %v190, 0.5
      %v193 = vmul.f32 %v191, 0.5
      %v194 = vmul.f32 %v190, 0.70710677
      %v195 = vmul.f32 %v191, 0.70710677
      %v196 = vmul.f32 %v194, %v194
      %v197 = vmin.f32 16.0, %v196
      %v198 = vmul.f32 %v197, 2.1237322e-06
      %v199 = vadd.f32 %v198, 0.00028619796
      %v200 = vmul.f32 %v197, %v199
      %v201 = vadd.f32 %v200, 0.0036580483
      %v202 = vmul.f32 %v197, %v201
      %v203 = vadd.f32 %v202, 0.05243302
      %v204 = vmul.f32 %v197, %v203
      %v205 = vadd.f32 %v204, 0.18741608
      %v206 = vmul.f32 %v197, %v205
      %v207 = vadd.f32 %v206, 1.1283791
      %v208 = vmul.f32 %v194, %v207
      %v209 = vmul.f32 %v197, 3.8918573e-05
      %v210 = vadd.f32 %v209, 0.001143296
      %v211 = vmul.f32 %v197, %v210
      %v212 = vadd.f32 %v211, 0.014752088
      %v213 = vmul.f32 %v197, %v212
      %v214 = vadd.f32 %v213, 0.112945676
      %v215 = vmul.f32 %v197, %v214
      %v216 = vadd.f32 %v215, 0.4994258
      %v217 = vmul.f32 %v197, %v216
      %v218 = vadd.f32 %v217, 1.0
      %v219 = vrcp.pop %v218
      %v220 = vmul.f32 %v218, %v219
      %v221 = vsub.f32 1.0, %v220
      %v222 = vmul.f32 %v219, %v221
      %v223 = vadd.f32 %v219, %v222
      %vm224 = vweird.f32 %v218
      %vm225 = vweird.f32 %v219
      %vm226 = vmor %vm224, %vm225
      %v227 = vsel %vm226, %v219, %v223
      %v228 = vand.u32 2147483647, %v218
      %vm229 = vcmp.eq.f32.partialorder %v228, 8.507059e+37
      %v230 = vand.u32 %v218, 2147483648
      %v231 = vor.u32 1.1754944e-38, %v230
      %v232 = vsel %vm229, %v231, %v227
      %v233 = vmul.f32 %v208, %v232
      %v234 = vmin.f32 %v233, 1.0
      %v235 = vmax.f32 %v234, -1.0
      %v236 = vmul.f32 %v195, %v195
      %v237 = vmin.f32 16.0, %v236
      %v238 = vmul.f32 %v237, 2.1237322e-06
      %v239 = vadd.f32 %v238, 0.00028619796
      %v240 = vmul.f32 %v237, %v239
      %v241 = vadd.f32 %v240, 0.0036580483
      %v242 = vmul.f32 %v237, %v241
      %v243 = vadd.f32 %v242, 0.05243302
      %v244 = vmul.f32 %v237, %v243
      %v245 = vadd.f32 %v244, 0.18741608
      %v246 = vmul.f32 %v237, %v245
      %v247 = vadd.f32 %v246, 1.1283791
      %v248 = vmul.f32 %v195, %v247
      %v249 = vmul.f32 %v237, 3.8918573e-05
      %v250 = vadd.f32 %v249, 0.001143296
      %v251 = vmul.f32 %v237, %v250
      %v252 = vadd.f32 %v251, 0.014752088
      %v253 = vmul.f32 %v237, %v252
      %v254 = vadd.f32 %v253, 0.112945676
      %v255 = vmul.f32 %v237, %v254
      %v256 = vadd.f32 %v255, 0.4994258
      %v257 = vmul.f32 %v237, %v256
      %v258 = vadd.f32 %v257, 1.0
      %v259 = vrcp.pop %v258
      %v260 = vmul.f32 %v258, %v259
      %v261 = vsub.f32 1.0, %v260
      %v262 = vmul.f32 %v259, %v261
      %v263 = vadd.f32 %v259, %v262
      %vm264 = vweird.f32 %v258
      %vm265 = vweird.f32 %v259
      %vm266 = vmor %vm264, %vm265
      %v267 = vsel %vm266, %v259, %v263
      %v268 = vand.u32 2147483647, %v258
      %vm269 = vcmp.eq.f32.partialorder %v268, 8.507059e+37
      %v270 = vand.u32 %v258, 2147483648
      %v271 = vor.u32 1.1754944e-38, %v270
      %v272 = vsel %vm269, %v271, %v267
      %v273 = vmul.f32 %v248, %v272
      %v274 = vmin.f32 %v273, 1.0
      %v275 = vmax.f32 %v274, -1.0
      %v276 = vadd.f32 %v235, 1.0
      %v277 = vadd.f32 %v275, 1.0
      %v278 = vmul.f32 %v192, %v276
      %v279 = vmul.f32 %v193, %v277
      %s280 = smul.addr %s121, 8
      %s281 = scalar_lea.vmem [#allocation2], %s280
      %282 = vst [vmem:[%s281] sm:$0xff] %v278
      %283 = vst [vmem:[%s281 + $0x8] sm:$0xff] %v279
    $region29: #{tpu_custom_call.1} parent=1 // loop_footer
      %s120 = sadd.s32 1, %s116
    $region30: #{tpu_custom_call.1} parent=1 // loop_footer_branch
      %115 = sbr.rel target = $region26
    $region31: #{tpu_custom_call.1} parent=1 // loop_exit
      _
    // Predicated region
    $region32: #{tpu_custom_call.1} parent=1 // pred_check
      _
    $region33: #{tpu_custom_call.1} parent=1 // pred_check_branch
      %285 = sbr.rel (0) target = $region35
    $region34: #{tpu_custom_call.1} parent=1 // pred_region
      %287 = vsyncadd [#allocation3], 0
      %s288 = sshll.u32 [#allocation2], 4
      %s289 = int_to_ptr.vmem [resolvable:$true] %s288
      %s290 = sshll.u32 %s4, 4
      %s291 = int_to_ptr.hbm [resolvable:$true] %s290
      %296 = dma.vmem_to_hbm [thread:$0]  %s289, 512, %s291, [#allocation3], 256, 256, 16
    $region35: #{tpu_custom_call.1} parent=1 // pred_fallthru
      _
    // Predicated region
    $region36: #{tpu_custom_call.1} parent=1 // pred_check
      _
    $region37: #{tpu_custom_call.1} parent=1 // pred_check_branch
      %298 = sbr.rel (0) target = $region39
    $region38: #{tpu_custom_call.1} parent=1 // pred_region
      %300 = dma.done [#allocation3], 512
    $region39: #{tpu_custom_call.1} parent=1 // pred_fallthru
      _
    %301 = vsyncpa [#allocation3], 1

</llo_original>
